<compile_context>
chip_gen: v5e
topology: v5e:2x2
jax: 0.10.0
libtpu: 0.0.40
codegen_flags: <defaults>
</compile_context>

<pallas_src>
import jax
import jax.numpy as jnp
from jax.experimental import pallas as pl
from jax.experimental.pallas import tpu as pltpu


HOLIDAY_SIZE = 24  # vocab size from the module __init__


def _embed_kernel(idx_ref, table_ref, out_ref):
    # idx_ref:   (TR, P)      int32, packed indices (group offset j*V pre-added)
    # table_ref: (P*V, P*D)   block-diagonal embedding table (resident)
    # out_ref:   (TR, P*D)    P logical embedding rows packed per output row
    idx = idx_ref[...]                                   # (TR, P)
    tr = idx.shape[0]
    p = idx.shape[1]
    pv = table_ref.shape[0]

    # Grouped one-hot: column (j*V + k) is set iff packed lane j of this row
    # holds index k.  Offsets were folded into idx in the wrapper, so the P
    # comparisons hit disjoint column ranges and can simply be summed.
    v = jax.lax.broadcasted_iota(jnp.int32, (tr, pv), 1)
    onehot = (v == idx[:, 0:1]).astype(table_ref.dtype)
    for j in range(1, p):
        onehot = onehot + (v == idx[:, j:j + 1]).astype(table_ref.dtype)

    # (TR, P*V) x (P*V, P*D) -> (TR, P*D); one-hot rows select exact table rows.
    out_ref[...] = jnp.dot(
        onehot, table_ref[...], preferred_element_type=jnp.float32
    ).astype(out_ref.dtype)


def holiday_embedding(x, table, *, target_tile_rows=8192):
    """x: (B, L, C) integer array; table: (24, d_model) float32.
    Returns (B, L, d_model) float32, matching HolidayEmbedding.forward."""
    B, L, _C = x.shape
    V, D = table.shape
    N = B * L

    # Lane-packing factor: pack P logical rows per 128-lane output row.
    if D < 128 and 128 % D == 0:
        P = 128 // D
    else:
        P = 1
    PV, PD = P * V, P * D

    # Tile sizing: multiple of 8*P logical rows (packed block is (>=8, PD)),
    # as large as possible up to the target; pad N up to a tile multiple.
    base = 8 * P
    needed = -(-N // base) * base
    tile_rows = min(-(-target_tile_rows // base) * base, needed)
    n_pad = -(-N // tile_rows) * tile_rows
    TR = tile_rows // P          # packed rows per grid step
    NR = n_pad // P              # total packed rows
    grid = (NR // TR,)

    # --- index prep (wrapper-side, cheap) ------------------------------------
    idx = x[:, :, -1].astype(jnp.int32).reshape(-1)       # (N,)
    # TODO(synk): PyTorch nn.Embedding raises on out-of-range indices; we clamp
    # instead of silently producing zeros.
    idx = jnp.clip(idx, 0, V - 1)
    idx = jnp.pad(idx, (0, n_pad - N))                    # pad rows -> index 0
    offsets = (jnp.arange(P, dtype=jnp.int32) * V)[None, :]
    idx_packed = idx.reshape(NR, P) + offsets             # (NR, P)

    # --- block-diagonal table: copy j at rows [jV,(j+1)V), cols [jD,(j+1)D) --
    table_blk = jnp.zeros((PV, PD), table.dtype)
    for j in range(P):
        table_blk = table_blk.at[j * V:(j + 1) * V, j * D:(j + 1) * D].set(table)

    cost = pl.CostEstimate(
        flops=2 * NR * PV * PD,
        transcendentals=0,
        bytes_accessed=n_pad * D * 4 + n_pad * 4 + PV * PD * 4,
    )

    out = pl.pallas_call(
        _embed_kernel,
        out_shape=jax.ShapeDtypeStruct((NR, PD), jnp.float32),
        grid_spec=pltpu.PrefetchScalarGridSpec(
            num_scalar_prefetch=0,
            grid=grid,
            in_specs=[
                pl.BlockSpec((TR, P), lambda i: (i, 0)),    # packed index tile
                pl.BlockSpec((PV, PD), lambda i: (0, 0)),   # full table, resident
            ],
            out_specs=pl.BlockSpec((TR, PD), lambda i: (i, 0)),  # lane-dense vst
        ),
        compiler_params=pltpu.CompilerParams(
            dimension_semantics=("parallel",),   # shards the row loop across TCs
        ),
        cost_estimate=cost,
    )(idx_packed, table_blk)

    # Unpack: packed row r, lanes [j*D,(j+1)*D) hold logical row r*P + j.
    out = out.reshape(n_pad, D)[:N]
    return out.reshape(B, L, D)


def reference(x, table):
    idx = x[:, :, -1].astype(jnp.int32)
    return table[idx]


if __name__ == "__main__":
    key = jax.random.PRNGKey(0)
    k_tab, k_x = jax.random.split(key)

    B, L, C = 2, 8, 4
    d_model = 32

    # Deterministic parameter init (nn.Embedding default ~ N(0, 1)).
    table = jax.random.normal(k_tab, (HOLIDAY_SIZE, d_model), dtype=jnp.float32)

    # Integer "timestamp feature" input; last channel holds holiday ids in [0, 24).
    x = jax.random.randint(k_x, (B, L, C), 0, HOLIDAY_SIZE, dtype=jnp.int32)

    out = holiday_embedding(x, table)
    out = jax.block_until_ready(out)

    ref = reference(x, table)
    assert out.shape == (B, L, d_model)
    assert jnp.allclose(out, ref, atol=1e-6), "mismatch vs reference gather"

    print("KERNEL_OK")
</pallas_src>

<mosaic_0001>
module attributes {stable_mosaic.version = 11 : i64} {
  func.func @_embed_kernel(%arg0: i32, %arg1: memref<8x4xi32, #tpu.memory_space<vmem>>, %arg2: memref<96x128xf32, #tpu.memory_space<vmem>>, %arg3: memref<8x128xf32, #tpu.memory_space<vmem>>) attributes {dimension_semantics = [#tpu.dimension_semantics<parallel>], iteration_bounds = array<i64: 1>, scalar_prefetch = 0 : i64, scratch_operands = 0 : i64, tpu.core_type = #tpu.core_type<tc>, window_params = [{transform_indices = @transform_0, window_bounds = array<i64: 8, 4>}, {pipeline_mode = #tpu.pipeline_mode<synchronous>, transform_indices = @transform_1, window_bounds = array<i64: 96, 128>}, {transform_indices = @transform_2, window_bounds = array<i64: 8, 128>}]} {
    %c0 = arith.constant 0 : index
    %c0_0 = arith.constant 0 : index
    %0 = vector.load %arg1[%c0, %c0_0] : memref<8x4xi32, #tpu.memory_space<vmem>>, vector<8x4xi32>
    %1 = tpu.iota {dimensions = array<i32: 1>} : vector<8x96xi32>
    %2 = vector.extract_strided_slice %0 {offsets = [0, 0], sizes = [8, 1], strides = [1, 1]} : vector<8x4xi32> to vector<8x1xi32>
    %3 = vector.broadcast %2 : vector<8x1xi32> to vector<8x96xi32>
    %4 = arith.cmpi eq, %1, %3 : vector<8x96xi32>
    %5 = arith.extui %4 : vector<8x96xi1> to vector<8x96xi32>
    %6 = arith.sitofp %5 : vector<8x96xi32> to vector<8x96xf32>
    %7 = vector.extract_strided_slice %0 {offsets = [0, 1], sizes = [8, 1], strides = [1, 1]} : vector<8x4xi32> to vector<8x1xi32>
    %8 = vector.broadcast %7 : vector<8x1xi32> to vector<8x96xi32>
    %9 = arith.cmpi eq, %1, %8 : vector<8x96xi32>
    %10 = arith.extui %9 : vector<8x96xi1> to vector<8x96xi32>
    %11 = arith.sitofp %10 : vector<8x96xi32> to vector<8x96xf32>
    %12 = arith.addf %6, %11 : vector<8x96xf32>
    %13 = vector.extract_strided_slice %0 {offsets = [0, 2], sizes = [8, 1], strides = [1, 1]} : vector<8x4xi32> to vector<8x1xi32>
    %14 = vector.broadcast %13 : vector<8x1xi32> to vector<8x96xi32>
    %15 = arith.cmpi eq, %1, %14 : vector<8x96xi32>
    %16 = arith.extui %15 : vector<8x96xi1> to vector<8x96xi32>
    %17 = arith.sitofp %16 : vector<8x96xi32> to vector<8x96xf32>
    %18 = arith.addf %12, %17 : vector<8x96xf32>
    %19 = vector.extract_strided_slice %0 {offsets = [0, 3], sizes = [8, 1], strides = [1, 1]} : vector<8x4xi32> to vector<8x1xi32>
    %20 = vector.broadcast %19 : vector<8x1xi32> to vector<8x96xi32>
    %21 = arith.cmpi eq, %1, %20 : vector<8x96xi32>
    %22 = arith.extui %21 : vector<8x96xi1> to vector<8x96xi32>
    %23 = arith.sitofp %22 : vector<8x96xi32> to vector<8x96xf32>
    %24 = arith.addf %18, %23 : vector<8x96xf32>
    %c0_1 = arith.constant 0 : index
    %c0_2 = arith.constant 0 : index
    %25 = vector.load %arg2[%c0_1, %c0_2] : memref<96x128xf32, #tpu.memory_space<vmem>>, vector<96x128xf32>
    %cst = arith.constant dense<0.000000e+00> : vector<8x128xf32>
    %26 = tpu.matmul %24, %25, %cst {dimension_numbers = #tpu.dot_dimension_numbers<[1], [0], [0], [1], [0, 0, 1, 1], [], []>} : vector<8x96xf32>, vector<96x128xf32>, vector<8x128xf32> -> vector<8x128xf32>
    %c0_3 = arith.constant 0 : index
    %c0_4 = arith.constant 0 : index
    %27 = vector.load %arg3[%c0_3, %c0_4] : memref<8x128xf32, #tpu.memory_space<vmem>>, vector<8x128xf32>
    tpu.vector_store %arg3[%c0_3, %c0_4], %26 {strides = array<i32>} : memref<8x128xf32, #tpu.memory_space<vmem>>, vector<8x128xf32>,
    return
  }
  func.func @transform_0(%arg0: i32) -> (i32, i32) {
    %c0_i32 = arith.constant 0 : i32
    %c0_i32_0 = arith.constant 0 : i32
    return %arg0, %c0_i32 : i32, i32
  }
  func.func @transform_1(%arg0: i32) -> (i32, i32) {
    %c0_i32 = arith.constant 0 : i32
    %c0_i32_0 = arith.constant 0 : i32
    %c0_i32_1 = arith.constant 0 : i32
    return %c0_i32, %c0_i32_0 : i32, i32
  }
  func.func @transform_2(%arg0: i32) -> (i32, i32) {
    %c0_i32 = arith.constant 0 : i32
    %c0_i32_0 = arith.constant 0 : i32
    return %arg0, %c0_i32 : i32, i32
  }
}

</mosaic_0001>

<llo_original>
// kernel: tpu_custom_call.1
$region0: #{tpu_custom_call.1}
  #allocation0 [shape = 'u32[]', space=smem, size = 0x4, offset = 0x4, fixed_abs, tag = 'smem constant byte address 0x4 - core index']
  #allocation1 [shape = 'u32[72,128]{1,0:T(1,128)}', space=vmem, size = 0x9000, scoped, tag = 'internal scratch']
  %s0 = inlined_call_operand.vmem [shape: s32[8,4], index: 0, kind: input, shape index: {}]
  %s1 = inlined_call_operand.hbm [shape: f32[96,128], index: 1, kind: input, shape index: {}]
  %s2 = inlined_call_operand.hbm [shape: f32[8,128], index: 2, kind: output, shape index: {}]
  %s3 = sld [smem:[#allocation0]]
  $region22: #{tpu_custom_call.1} parent=0
    _
  %s5 = ssub.s32 1, %s3
  %s6 = scalar_select 0, %s5, %s3
  $region1: #{tpu_custom_call.1} parent=0
    #allocation2 [shape = 'u8[49152]{0}', space=vmem, size = 0xc000, scoped, tag = 'input window, operand 1, single buffered']
    #allocation3 [shape = 's32[1]{0}', space=sflag, size = 0x4, scoped, tag = 'scoped memory for tpu_custom_call.1']
    #allocation4 [shape = 's32[1]{0}', space=sflag, size = 0x4, scoped, tag = 'scoped memory for tpu_custom_call.1']
    #allocation5 [shape = 'u8[4096]{0}', space=vmem, size = 0x1000, scoped, tag = 'output window, operand 0, single buffered']
    %7 = vsyncpa [#allocation3], 0
    %8 = vsyncpa [#allocation4], 0
    // Predicated region
    $region2: #{tpu_custom_call.1} parent=1 // pred_check
      _
    $region3: #{tpu_custom_call.1} parent=1 // pred_check_branch
      %10 = sbr.rel (0) target = $region5
    $region4: #{tpu_custom_call.1} parent=1 // pred_region
      _
    $region5: #{tpu_custom_call.1} parent=1 // pred_fallthru
      _
    // Predicated region
    $region6: #{tpu_custom_call.1} parent=1 // pred_check
      _
    $region7: #{tpu_custom_call.1} parent=1 // pred_check_branch
      %12 = sbr.rel (0) target = $region9
    $region8: #{tpu_custom_call.1} parent=1 // pred_region
      %14 = vsyncadd [#allocation3], 0
      %s15 = sshll.u32 %s1, 4
      %s16 = int_to_ptr.hbm [resolvable:$true] %s15
      %s17 = sshll.u32 [#allocation2], 4
      %s18 = int_to_ptr.vmem [resolvable:$true] %s17
      %23 = dma.hbm_to_vmem [thread:$0]  %s16, 1536, %s18, [#allocation3], 128, 128, 8
    $region9: #{tpu_custom_call.1} parent=1 // pred_fallthru
      _
    // Predicated region
    $region10: #{tpu_custom_call.1} parent=1 // pred_check
      _
    $region11: #{tpu_custom_call.1} parent=1 // pred_check_branch
      %25 = sbr.rel (0) target = $region13
    $region12: #{tpu_custom_call.1} parent=1 // pred_region
      %27 = dma.done [#allocation3], 1536
    $region13: #{tpu_custom_call.1} parent=1 // pred_fallthru
      _
    %v28 = vld [vmem:[%s0] sm:$0xff]
    %v29 = vlaneseq
    %v30 = vand.u32 %v29, 127
    %31 = vset.pattern.permute.xlu0 0
    %32 = vperm.xlu0 %31, %v28
    %v33 = vpop.permute.xlu0 %32
    %vm34 = vcmp.eq.s32.totalorder %v30, %v33
    %v35 = vsel %vm34, 1, 0
    %v36 = vcvt.s32.f32 %v35
    %37 = vset.pattern.permute.xlu0 1
    %38 = vperm.xlu0 %37, %v28
    %v39 = vpop.permute.xlu0 %38
    %vm40 = vcmp.eq.s32.totalorder %v30, %v39
    %v41 = vsel %vm40, 1, 0
    %v42 = vcvt.s32.f32 %v41
    %v43 = vadd.f32 %v36, %v42
    %44 = vset.pattern.permute.xlu0 2
    %45 = vperm.xlu0 %44, %v28
    %v46 = vpop.permute.xlu0 %45
    %vm47 = vcmp.eq.s32.totalorder %v30, %v46
    %v48 = vsel %vm47, 1, 0
    %v49 = vcvt.s32.f32 %v48
    %v50 = vadd.f32 %v43, %v49
    %51 = vset.pattern.permute.xlu0 3
    %52 = vperm.xlu0 %51, %v28
    %v53 = vpop.permute.xlu0 %52
    %vm54 = vcmp.eq.s32.totalorder %v30, %v53
    %v55 = vsel %vm54, 1, 0
    %v56 = vcvt.s32.f32 %v55
    %v57 = vadd.f32 %v50, %v56
    %v58 = vld [vmem:[#allocation2] sm:$0xff]
    %v59 = vld [vmem:[#allocation2 + $0x8] sm:$0xff]
    %v60 = vld [vmem:[#allocation2 + $0x10] sm:$0xff]
    %v61 = vld [vmem:[#allocation2 + $0x18] sm:$0xff]
    %v62 = vld [vmem:[#allocation2 + $0x20] sm:$0xff]
    %v63 = vld [vmem:[#allocation2 + $0x28] sm:$0xff]
    %v64 = vld [vmem:[#allocation2 + $0x30] sm:$0xff]
    %v65 = vld [vmem:[#allocation2 + $0x38] sm:$0xff]
    %v66 = vld [vmem:[#allocation2 + $0x40] sm:$0xff]
    %v67 = vld [vmem:[#allocation2 + $0x48] sm:$0xff]
    %v68 = vld [vmem:[#allocation2 + $0x50] sm:$0xff]
    %v69 = vld [vmem:[#allocation2 + $0x58] sm:$0xff]
    %vm70 = vcmask 785408
    %v72 = vsel %vm70, %v57, 0
    %74 = vmatpush.msra.mxu0 0.0
    %75 = vmatpush.msra.mxu0 0.0
    %76 = vmatpush.msra.mxu0 0.0
    %77 = vmatpush.msra.mxu0 0.0
    %78 = vmatpush.msra.mxu0 %v69
    %79 = vmatpush.msra.mxu0 %v68
    %80 = vmatpush.msra.mxu0 %v67
    %81 = vmatpush.msra.mxu0 %v66
    %82 = vmatpush.msra.mxu0 %v65
    %83 = vmatpush.msra.mxu0 %v64
    %84 = vmatpush.msra.mxu0 %v63
    %85 = vmatpush.msra.mxu0 %v62
    %86 = vmatpush.msra.mxu0 %v61
    %87 = vmatpush.msra.mxu0 %v60
    %88 = vmatpush.msra.mxu0 %v59
    %89 = vmatpush.msra.mxu0 %v58
    %90 = vmatmul.f32.gmra.mxu0 %v72
    %v91 = vpop.f32.mrf.mxu0
    %v92 = vadd.f32 0.0, %v91
    %93 = vdwg.mxu0
    %94 = vst [vmem:[#allocation5] sm:$0xff] %v92
    // Predicated region
    $region14: #{tpu_custom_call.1} parent=1 // pred_check
      _
    $region15: #{tpu_custom_call.1} parent=1 // pred_check_branch
      %96 = sbr.rel (0) target = $region17
    $region16: #{tpu_custom_call.1} parent=1 // pred_region
      %98 = vsyncadd [#allocation4], 0
      %s100 = sshll.u32 [#allocation5], 4
      %s101 = int_to_ptr.vmem [resolvable:$true] %s100
      %s102 = sshll.u32 %s2, 4
      %s103 = int_to_ptr.hbm [resolvable:$true] %s102
      %105 = dma.vmem_to_hbm [thread:$0]  %s101, 128, %s103, [#allocation4]
    $region17: #{tpu_custom_call.1} parent=1 // pred_fallthru
      _
    // Predicated region
    $region18: #{tpu_custom_call.1} parent=1 // pred_check
      _
    $region19: #{tpu_custom_call.1} parent=1 // pred_check_branch
      %107 = sbr.rel (0) target = $region21
    $region20: #{tpu_custom_call.1} parent=1 // pred_region
      %109 = dma.done [#allocation4], 128
    $region21: #{tpu_custom_call.1} parent=1 // pred_fallthru
      _
    %110 = vsyncpa [#allocation3], 1
    %111 = vsyncpa [#allocation4], 1

</llo_original>
